<compile_context>
chip_gen: v6e
topology: v6e:2x2x1
jax: 0.10.0
libtpu: 0.0.40
codegen_flags: <defaults>
</compile_context>

<pallas_src>
import functools

import numpy as np
import jax
import jax.numpy as jnp
from jax import lax
from jax.experimental import pallas as pl
from jax.experimental.pallas import tpu as pltpu


def _round_up(x, m):
    return ((x + m - 1) // m) * m


def _cdiv(a, b):
    return (a + b - 1) // b


def _shrink(v, align, floor):
    """Halve v, keeping alignment and a floor; returns v unchanged if at floor."""
    nv = max(floor, _round_up(max(1, v // 2), align))
    return nv if nv < v else v


def _vmem_capacity_bytes():
    # Generation-aware capacity; conservative fallback = v7x per-TC VMEM.
    try:
        return int(pltpu.get_tpu_info().vmem_capacity_bytes)
    except Exception:
        return 64 << 20


def _matern_gram_kernel(scale_ref, fx_ref, fy_ref, xx_ref, yy_ref, o_ref,
                        acc_ref, *, p):
    """One (tm, tn) output tile, K-blocked over the concatenated feature dim.

    scale_ref : SMEM (2,)        hoisted sigma-derived scalars
    fx_ref    : VMEM (tm, tk)    features of X tile (f32 or bf16)
    fy_ref    : VMEM (tn, tk)    features of Y tile (f32 or bf16)
    xx_ref    : VMEM (tm, 1)     f32 row norms of X tile
    yy_ref    : VMEM (1, tn)     f32 row norms of Y tile
    o_ref     : VMEM (tm, tn)    output tile (f32 or bf16)
    acc_ref   : VMEM (tm, tn)    f32 accumulator scratch
    """
    k = pl.program_id(2)

    @pl.when(k == 0)
    def _():
        acc_ref[...] = jnp.zeros_like(acc_ref)

    # Single fused MXU contraction, contracting dim 1 of both -> no transpose.
    acc_ref[...] += lax.dot_general(
        fx_ref[...], fy_ref[...],
        dimension_numbers=(((1,), (1,)), ((), ())),
        preferred_element_type=jnp.float32,
    )

    @pl.when(k == pl.num_programs(2) - 1)
    def _():
        # Elementwise tail kept in f32 (v5e VPU/EUP have no bf16).
        g = xx_ref[...] - 2.0 * acc_ref[...] + yy_ref[...]
        g = jnp.maximum(g, 0.0)              # fp-cancellation guard (both paths)
        s0 = scale_ref[0]
        if p == np.inf:
            # s0 == -1 / (2 sigma^2)
            out = jnp.exp(g * s0)
        else:
            # s0 == -sqrt(2p)/sigma, scale_ref[1] == 1/sigma
            r = jnp.sqrt(g)                  # == dist * sigma
            e = jnp.exp(r * s0)              # exp(-sqrt(2p) * dist), EUP
            if p == 0.5:
                out = e
            else:
                dist = r * scale_ref[1]
                if p == 1.5:
                    out = (np.sqrt(3.0) * dist + 1.0) * e
                else:  # p == 2.5
                    out = (np.sqrt(5.0) * dist + 1.0
                           + (5.0 / 3.0) * dist * dist) * e
        o_ref[...] = out.astype(o_ref.dtype)


class MaternKernelPallas:
    """JAX/Pallas port of MaternKernel (forward / gram only)."""

    def __init__(self, nets=None, sigma=1.0, lam=0.01, p=np.inf,
                 tile_m=512, tile_n=512, tile_k=None,
                 matmul_dtype=jnp.float32, out_dtype=jnp.float32):
        if p not in (0.5, 1.5, 2.5, np.inf):
            raise ValueError("p must be one of {0.5, 1.5, 2.5, inf}")
        # nets: list of JAX callables (feature maps); default = [identity]
        self.nets = nets if nets is not None else [lambda t: t]
        self.log_sigma = jnp.log(jnp.asarray(sigma, jnp.float32))
        self.log_lam = jnp.log(jnp.asarray(lam, jnp.float32))  # parity; unused in forward
        self.p = p
        self.tile_m = int(tile_m)
        self.tile_n = int(tile_n)
        self.tile_k = None if tile_k is None else int(tile_k)
        self.matmul_dtype = matmul_dtype
        self.out_dtype = out_dtype

    def __call__(self, x, y):
        return self.gram(x, y)

    # ---- tile / budget selection -------------------------------------------
    def _choose_tiles(self, n, m, kd, ws_budget):
        in_b = jnp.dtype(self.matmul_dtype).itemsize
        out_b = jnp.dtype(self.out_dtype).itemsize

        tm = _round_up(min(self.tile_m, _round_up(n, 8)), 8)
        tn = _round_up(min(self.tile_n, _round_up(m, 128)), 128)
        kd128 = _round_up(kd, 128)
        tk = kd128 if self.tile_k is None else min(_round_up(self.tile_k, 128), kd128)

        def ws(tm, tn, tk):
            # double-buffered inputs + output, single accumulator, tiny xx/yy
            return (2 * (tm + tn) * tk * in_b
                    + 2 * tm * tn * out_b
                    + tm * tn * 4
                    + 2 * (tm + tn) * 4)

        while ws(tm, tn, tk) > ws_budget:
            new_tk = _shrink(tk, 128, 128)           # K-block first (keeps tiles big)
            if new_tk < tk:
                tk = new_tk
                continue
            if tn >= tm:
                new_tn = _shrink(tn, 128, 128)
                if new_tn < tn:
                    tn = new_tn
                    continue
            new_tm = _shrink(tm, 8, 8)
            if new_tm < tm:
                tm = new_tm
                continue
            new_tn = _shrink(tn, 128, 128)
            if new_tn < tn:
                tn = new_tn
                continue
            break
        return tm, tn, tk

    # ---- forward -------------------------------------------------------------
    def gram(self, x, y):
        # Fuse all feature nets into one long contraction:
        #   sum_k ||f_k(x) - f_k(y)||^2 == ||concat_k f_k(x) - concat_k f_k(y)||^2
        fx = jnp.concatenate([net(x) for net in self.nets], axis=-1).astype(jnp.float32)
        fy = jnp.concatenate([net(y) for net in self.nets], axis=-1).astype(jnp.float32)
        n, kd = fx.shape
        m = fy.shape[0]

        # Row norms precomputed once in f32 (exact, no per-tile XLU reductions).
        xx = jnp.sum(fx * fx, axis=-1, keepdims=True)        # [N, 1]
        yy = jnp.sum(fy * fy, axis=-1, keepdims=True).T      # [1, M]

        # Generation-aware VMEM budgets (v7x 64 MiB/TC is the binding constraint).
        cap = _vmem_capacity_bytes()
        vmem_limit = min(3 * cap // 4, 96 << 20)
        ws_budget = max(8 << 20, vmem_limit // 2)

        tm, tn, tk = self._choose_tiles(n, m, kd, ws_budget)
        n_grid, m_grid, k_grid = _cdiv(n, tm), _cdiv(m, tn), _cdiv(kd, tk)
        n_pad, m_pad, kd_pad = n_grid * tm, m_grid * tn, k_grid * tk

        # MXU operands optionally in bf16; xx/yy & tail stay f32.
        fx = jnp.pad(fx, ((0, n_pad - n), (0, kd_pad - kd))).astype(self.matmul_dtype)
        fy = jnp.pad(fy, ((0, m_pad - m), (0, kd_pad - kd))).astype(self.matmul_dtype)
        xx = jnp.pad(xx, ((0, n_pad - n), (0, 0)))
        yy = jnp.pad(yy, ((0, 0), (0, m_pad - m)))

        # Hoisted sigma-derived scalars (multiplies only inside the kernel).
        sigma = jnp.exp(self.log_sigma)
        if self.p == np.inf:
            scales = jnp.stack([-0.5 / (sigma * sigma), jnp.zeros_like(sigma)])
        else:
            scales = jnp.stack([-np.sqrt(2.0 * self.p) / sigma, 1.0 / sigma])
        scales = scales.astype(jnp.float32)

        # Grid orientation: re-stream the cheaper operand on the inner axis.
        # (inner-operand HBM traffic ~ outer_grid_count * inner_rows * KD)
        swap = (n_grid * m_pad) > (m_grid * n_pad)
        if not swap:
            grid = (n_grid, m_grid, k_grid)
            fx_map = lambda a, b, k: (a, k)
            fy_map = lambda a, b, k: (b, k)
            xx_map = lambda a, b, k: (a, 0)
            yy_map = lambda a, b, k: (0, b)
            o_map = lambda a, b, k: (a, b)
        else:
            grid = (m_grid, n_grid, k_grid)
            fx_map = lambda a, b, k: (b, k)
            fy_map = lambda a, b, k: (a, k)
            xx_map = lambda a, b, k: (b, 0)
            yy_map = lambda a, b, k: (0, a)
            o_map = lambda a, b, k: (b, a)
        # Note (v7x): with 2 TCs the two "parallel" axes are sharded across
        # cores; for tiny grids one core may idle, which is acceptable here.

        kernel = functools.partial(_matern_gram_kernel, p=self.p)

        out = pl.pallas_call(
            kernel,
            out_shape=jax.ShapeDtypeStruct((n_pad, m_pad), self.out_dtype),
            grid=grid,
            in_specs=[
                pl.BlockSpec(memory_space=pltpu.MemorySpace.SMEM),   # scales
                pl.BlockSpec((tm, tk), fx_map),                      # fx tile
                pl.BlockSpec((tn, tk), fy_map),                      # fy tile
                pl.BlockSpec((tm, 1), xx_map),                       # xx tile
                pl.BlockSpec((1, tn), yy_map),                       # yy tile
            ],
            out_specs=pl.BlockSpec((tm, tn), o_map),
            scratch_shapes=[pltpu.VMEM((tm, tn), jnp.float32)],      # accumulator
            compiler_params=pltpu.CompilerParams(
                dimension_semantics=("parallel", "parallel", "arbitrary"),
                vmem_limit_bytes=int(vmem_limit)),
        )(scales, fx, fy, xx, yy)

        return out[:n, :m]


def _reference_gram(x, y, nets, log_sigma, p):
    """Plain-JAX reference mirroring the PyTorch forward."""
    g = 0.0
    for net in nets:
        fx, fy = net(x).astype(jnp.float32), net(y).astype(jnp.float32)
        xx = jnp.sum(fx * fx, axis=-1, keepdims=True)
        yy = jnp.sum(fy * fy, axis=-1, keepdims=True)
        g = g + (xx - 2.0 * fx @ fy.T + yy.T)
    sigma = jnp.exp(log_sigma)
    if p == np.inf:
        return jnp.exp(-g / (2.0 * sigma ** 2))
    dist = jnp.sqrt(jnp.maximum(g, 0.0)) / sigma
    e = jnp.exp(-np.sqrt(2.0 * p) * dist)
    if p == 0.5:
        c = 1.0
    elif p == 1.5:
        c = np.sqrt(3.0) * dist + 1.0
    else:
        c = np.sqrt(5.0) * dist + 1.0 + (5.0 / 3.0) * dist ** 2
    return c * e


if __name__ == "__main__":
    key = jax.random.PRNGKey(0)
    k1, k2, k3, k4, k5, k6 = jax.random.split(key, 6)

    # 1) Default module (p = inf, single identity net) -> RBF path, f32.
    N, M, D = 8, 8, 32
    x = jax.random.normal(k1, (N, D), dtype=jnp.float32)
    y = jax.random.normal(k2, (M, D), dtype=jnp.float32)
    mod_rbf = MaternKernelPallas(sigma=1.0, lam=0.01, p=np.inf)
    out_rbf = jax.block_until_ready(mod_rbf(x, y))
    ref_rbf = _reference_gram(x, y, mod_rbf.nets, mod_rbf.log_sigma, np.inf)
    assert out_rbf.shape == (N, M)
    np.testing.assert_allclose(np.asarray(out_rbf), np.asarray(ref_rbf),
                               rtol=1e-5, atol=1e-5)

    # 2) Matern p = 1.5 with two feature nets (fused-concat contraction), f32.
    nets = [lambda t: t, lambda t: 2.0 * t]
    mod_m = MaternKernelPallas(nets=nets, sigma=1.3, lam=0.01, p=1.5)
    out_m = jax.block_until_ready(mod_m(x, y))
    ref_m = _reference_gram(x, y, nets, mod_m.log_sigma, 1.5)
    assert out_m.shape == (N, M)
    np.testing.assert_allclose(np.asarray(out_m), np.asarray(ref_m),
                               rtol=1e-5, atol=1e-5)

    # 3) Matern p = 2.5: multi-tile grid, K-blocking (k_grid > 1) and
    #    orientation swap (M > N), small tile overrides to exercise the paths.
    N3, M3, D3 = 40, 272, 80
    x3 = jax.random.normal(k3, (N3, D3), dtype=jnp.float32)
    y3 = jax.random.normal(k4, (M3, D3), dtype=jnp.float32)
    mod_3 = MaternKernelPallas(nets=nets, sigma=2.0, lam=0.01, p=2.5,
                               tile_m=16, tile_n=128, tile_k=128)
    out_3 = jax.block_until_ready(mod_3(x3, y3))
    ref_3 = _reference_gram(x3, y3, nets, mod_3.log_sigma, 2.5)
    assert out_3.shape == (N3, M3)
    np.testing.assert_allclose(np.asarray(out_3), np.asarray(ref_3),
                               rtol=1e-4, atol=1e-5)

    # 4) bf16 MXU operands + bf16 output (halved HBM/VMEM), RBF path.
    Nb, Mb, Db = 64, 256, 64
    xb = jax.random.normal(k5, (Nb, Db), dtype=jnp.float32)
    yb = jax.random.normal(k6, (Mb, Db), dtype=jnp.float32)
    mod_b = MaternKernelPallas(sigma=8.0, lam=0.01, p=np.inf,
                               matmul_dtype=jnp.bfloat16, out_dtype=jnp.bfloat16)
    out_b = jax.block_until_ready(mod_b(xb, yb))
    ref_b = _reference_gram(xb, yb, mod_b.nets, mod_b.log_sigma, np.inf)
    assert out_b.shape == (Nb, Mb)
    np.testing.assert_allclose(np.asarray(out_b, dtype=np.float32),
                               np.asarray(ref_b), rtol=8e-2, atol=3e-2)

    # TODO(synk): log_lam / train_sigma / train_lam are training-time knobs with
    # no role in the forward gram computation; kept only for parameter parity.
    print("KERNEL_OK")
</pallas_src>

<mosaic_0001>
module attributes {stable_mosaic.version = 11 : i64} {
  func.func @_matern_gram_kernel(%arg0: i32, %arg1: i32, %arg2: i32, %arg3: memref<2xf32, #tpu.memory_space<smem>>, %arg4: memref<8x128xf32, #tpu.memory_space<vmem>>, %arg5: memref<128x128xf32, #tpu.memory_space<vmem>>, %arg6: memref<8x1xf32, #tpu.memory_space<vmem>>, %arg7: memref<1x128xf32, #tpu.memory_space<vmem>>, %arg8: memref<8x128xf32, #tpu.memory_space<vmem>>, %arg9: memref<8x128xf32, #tpu.memory_space<vmem>>) attributes {dimension_semantics = [#tpu.dimension_semantics<parallel>, #tpu.dimension_semantics<parallel>, #tpu.dimension_semantics<arbitrary>], iteration_bounds = array<i64: 1, 1, 1>, scalar_prefetch = 0 : i64, scratch_operands = 1 : i64, tpu.core_type = #tpu.core_type<tc>, window_params = [{transform_indices = @transform_0, window_bounds = array<i64: 2>}, {transform_indices = @transform_1, window_bounds = array<i64: 8, 128>}, {transform_indices = @transform_2, window_bounds = array<i64: 128, 128>}, {transform_indices = @transform_3, window_bounds = array<i64: 8, 1>}, {transform_indices = @transform_4, window_bounds = array<i64: 1, 128>}, {transform_indices = @transform_5, window_bounds = array<i64: 8, 128>}]} {
    %c0_i32 = arith.constant 0 : i32
    %0 = arith.cmpi eq, %arg2, %c0_i32 : i32
    %1 = arith.extui %0 : i1 to i32
    %c0_i32_0 = arith.constant 0 : i32
    %2 = arith.cmpi ne, %1, %c0_i32_0 : i32
    scf.if %2 {
      %cst_10 = arith.constant 0.000000e+00 : f32
      %12 = vector.broadcast %cst_10 : f32 to vector<8x128xf32>
      %c0_11 = arith.constant 0 : index
      %c0_12 = arith.constant 0 : index
      %13 = vector.load %arg9[%c0_11, %c0_12] : memref<8x128xf32, #tpu.memory_space<vmem>>, vector<8x128xf32>
      tpu.vector_store %arg9[%c0_11, %c0_12], %12 {strides = array<i32>} : memref<8x128xf32, #tpu.memory_space<vmem>>, vector<8x128xf32>,
    } else {
    }
    %c0 = arith.constant 0 : index
    %c0_1 = arith.constant 0 : index
    %3 = vector.load %arg9[%c0, %c0_1] : memref<8x128xf32, #tpu.memory_space<vmem>>, vector<8x128xf32>
    %c0_2 = arith.constant 0 : index
    %c0_3 = arith.constant 0 : index
    %4 = vector.load %arg4[%c0_2, %c0_3] : memref<8x128xf32, #tpu.memory_space<vmem>>, vector<8x128xf32>
    %c0_4 = arith.constant 0 : index
    %c0_5 = arith.constant 0 : index
    %5 = vector.load %arg5[%c0_4, %c0_5] : memref<128x128xf32, #tpu.memory_space<vmem>>, vector<128x128xf32>
    %cst = arith.constant dense<0.000000e+00> : vector<8x128xf32>
    %6 = tpu.matmul %4, %5, %cst {dimension_numbers = #tpu.dot_dimension_numbers<[1], [1], [0], [0], [0, 0, 1, 0], [], []>} : vector<8x128xf32>, vector<128x128xf32>, vector<8x128xf32> -> vector<8x128xf32>
    %7 = arith.addf %3, %6 : vector<8x128xf32>
    %c0_6 = arith.constant 0 : index
    %c0_7 = arith.constant 0 : index
    %8 = vector.load %arg9[%c0_6, %c0_7] : memref<8x128xf32, #tpu.memory_space<vmem>>, vector<8x128xf32>
    tpu.vector_store %arg9[%c0_6, %c0_7], %7 {strides = array<i32>} : memref<8x128xf32, #tpu.memory_space<vmem>>, vector<8x128xf32>,
    %c0_i32_8 = arith.constant 0 : i32
    %9 = arith.cmpi eq, %arg2, %c0_i32_8 : i32
    %10 = arith.extui %9 : i1 to i32
    %c0_i32_9 = arith.constant 0 : i32
    %11 = arith.cmpi ne, %10, %c0_i32_9 : i32
    scf.if %11 {
      %c0_10 = arith.constant 0 : index
      %c0_11 = arith.constant 0 : index
      %12 = vector.load %arg6[%c0_10, %c0_11] : memref<8x1xf32, #tpu.memory_space<vmem>>, vector<8x1xf32>
      %c0_12 = arith.constant 0 : index
      %c0_13 = arith.constant 0 : index
      %13 = vector.load %arg9[%c0_12, %c0_13] : memref<8x128xf32, #tpu.memory_space<vmem>>, vector<8x128xf32>
      %cst_14 = arith.constant 2.000000e+00 : f32
      %14 = vector.broadcast %cst_14 : f32 to vector<8x128xf32>
      %15 = arith.mulf %14, %13 : vector<8x128xf32>
      %16 = vector.broadcast %12 : vector<8x1xf32> to vector<8x128xf32>
      %17 = arith.subf %16, %15 : vector<8x128xf32>
      %c0_15 = arith.constant 0 : index
      %c0_16 = arith.constant 0 : index
      %18 = vector.load %arg7[%c0_15, %c0_16] : memref<1x128xf32, #tpu.memory_space<vmem>>, vector<1x128xf32>
      %19 = vector.broadcast %18 : vector<1x128xf32> to vector<8x128xf32>
      %20 = arith.addf %17, %19 : vector<8x128xf32>
      %cst_17 = arith.constant 0.000000e+00 : f32
      %21 = vector.broadcast %cst_17 : f32 to vector<8x128xf32>
      %22 = arith.maximumf %20, %21 : vector<8x128xf32>
      %c0_18 = arith.constant 0 : index
      %23 = memref.load %arg3[%c0_18] : memref<2xf32, #tpu.memory_space<smem>>
      %24 = vector.broadcast %23 : f32 to vector<8x128xf32>
      %25 = arith.mulf %22, %24 : vector<8x128xf32>
      %26 = math.exp %25 : vector<8x128xf32>
      %c0_19 = arith.constant 0 : index
      %c0_20 = arith.constant 0 : index
      %27 = vector.load %arg8[%c0_19, %c0_20] : memref<8x128xf32, #tpu.memory_space<vmem>>, vector<8x128xf32>
      tpu.vector_store %arg8[%c0_19, %c0_20], %26 {strides = array<i32>} : memref<8x128xf32, #tpu.memory_space<vmem>>, vector<8x128xf32>,
    } else {
    }
    return
  }
  func.func @transform_0(%arg0: i32, %arg1: i32, %arg2: i32) -> i32 {
    %c0_i32 = arith.constant 0 : i32
    %c0_i32_0 = arith.constant 0 : i32
    return %c0_i32 : i32
  }
  func.func @transform_1(%arg0: i32, %arg1: i32, %arg2: i32) -> (i32, i32) {
    %c0_i32 = arith.constant 0 : i32
    return %arg1, %arg2 : i32, i32
  }
  func.func @transform_2(%arg0: i32, %arg1: i32, %arg2: i32) -> (i32, i32) {
    %c0_i32 = arith.constant 0 : i32
    return %arg0, %arg2 : i32, i32
  }
  func.func @transform_3(%arg0: i32, %arg1: i32, %arg2: i32) -> (i32, i32) {
    %c0_i32 = arith.constant 0 : i32
    %c0_i32_0 = arith.constant 0 : i32
    return %arg1, %c0_i32 : i32, i32
  }
  func.func @transform_4(%arg0: i32, %arg1: i32, %arg2: i32) -> (i32, i32) {
    %c0_i32 = arith.constant 0 : i32
    %c0_i32_0 = arith.constant 0 : i32
    return %c0_i32, %arg0 : i32, i32
  }
  func.func @transform_5(%arg0: i32, %arg1: i32, %arg2: i32) -> (i32, i32) {
    %c0_i32 = arith.constant 0 : i32
    return %arg1, %arg0 : i32, i32
  }
}

</mosaic_0001>

<llo_original>
// kernel: tpu_custom_call.1
$region0: #{tpu_custom_call.1}
  #allocation0 [shape = 'u32[]', space=smem, size = 0x4, offset = 0x4, fixed_abs, tag = 'smem constant byte address 0x4 - core index']
  #allocation1 [shape = 'u32[144,128]{1,0:T(1,128)}', space=vmem, size = 0x12000, scoped, tag = 'internal scratch']
  #allocation2 [shape = 'f32[8,128]{1,0:T(8,128)}', space=vmem, size = 0x1000, scoped, tag = 'scratch operand']
  %s0 = inlined_call_operand.vmem [shape: f32[2], index: 0, kind: input, shape index: {}]
  %s1 = inlined_call_operand.vmem [shape: f32[8,128], index: 1, kind: input, shape index: {}]
  %s2 = inlined_call_operand.hbm [shape: f32[128,128], index: 2, kind: input, shape index: {}]
  %s3 = inlined_call_operand.vmem [shape: f32[8,1], index: 3, kind: input, shape index: {}]
  %s4 = inlined_call_operand.vmem [shape: f32[1,128], index: 4, kind: input, shape index: {}]
  %s5 = inlined_call_operand.hbm [shape: f32[8,128], index: 5, kind: output, shape index: {}]
  %s6 = sld [smem:[#allocation0]]
  $region46: #{tpu_custom_call.1} parent=0
    _
  %s8 = ssub.s32 1, %s6
  %s9 = scalar_select 0, %s8, %s6
  $region1: #{tpu_custom_call.1} parent=0
    #allocation3 [shape = 'u8[512]{0}', space=smem, size = 0x200, scoped, tag = 'input window, operand 0, single buffered']
    #allocation4 [shape = 's32[1]{0}', space=sflag, size = 0x4, scoped, tag = 'scoped memory for tpu_custom_call.1']
    #allocation5 [shape = 's32[1]{0}', space=sflag, size = 0x4, scoped, tag = 'scoped memory for tpu_custom_call.1']
    #allocation6 [shape = 's32[1]{0}', space=sflag, size = 0x4, scoped, tag = 'scoped memory for tpu_custom_call.1']
    #allocation7 [shape = 'u8[65536]{0}', space=vmem, size = 0x10000, scoped, tag = 'input window, operand 2, single buffered']
    #allocation8 [shape = 'u8[4096]{0}', space=vmem, size = 0x1000, scoped, tag = 'output window, operand 0, single buffered']
    %10 = vsyncpa [#allocation6], 0
    %11 = vsyncpa [#allocation4], 0
    %12 = vsyncpa [#allocation5], 0
    // Predicated region
    $region2: #{tpu_custom_call.1} parent=1 // pred_check
      _
    $region3: #{tpu_custom_call.1} parent=1 // pred_check_branch
      %14 = sbr.rel (0) target = $region5
    $region4: #{tpu_custom_call.1} parent=1 // pred_region
      %s16 = ssub.s32 16, 16
      %17 = vsyncadd [#allocation6], %s16
      %s19 = sshll.u32 %s0, 4
      %s20 = int_to_ptr.vmem [resolvable:$true] %s19
      %22 = dma.vmem_to_smem %s20, 16, [#allocation3], [#allocation6]
    $region5: #{tpu_custom_call.1} parent=1 // pred_fallthru
      _
    // Predicated region
    $region6: #{tpu_custom_call.1} parent=1 // pred_check
      _
    $region7: #{tpu_custom_call.1} parent=1 // pred_check_branch
      %24 = sbr.rel (0) target = $region9
    $region8: #{tpu_custom_call.1} parent=1 // pred_region
      _
    $region9: #{tpu_custom_call.1} parent=1 // pred_fallthru
      _
    // Predicated region
    $region10: #{tpu_custom_call.1} parent=1 // pred_check
      _
    $region11: #{tpu_custom_call.1} parent=1 // pred_check_branch
      %26 = sbr.rel (0) target = $region13
    $region12: #{tpu_custom_call.1} parent=1 // pred_region
      %s28 = ssub.s32 2048, 2048
      %29 = vsyncadd [#allocation4], %s28
      %s30 = sshll.u32 [#allocation7], 4
      %s31 = int_to_ptr.vmem [resolvable:$true] %s30
      %36 = dma.hbm_to_vmem [thread:$0]  %s2, 2048, %s31, [#allocation4], 128, 128, 8
    $region13: #{tpu_custom_call.1} parent=1 // pred_fallthru
      _
    // Predicated region
    $region14: #{tpu_custom_call.1} parent=1 // pred_check
      _
    $region15: #{tpu_custom_call.1} parent=1 // pred_check_branch
      %38 = sbr.rel (0) target = $region17
    $region16: #{tpu_custom_call.1} parent=1 // pred_region
      _
    $region17: #{tpu_custom_call.1} parent=1 // pred_fallthru
      _
    // Predicated region
    $region18: #{tpu_custom_call.1} parent=1 // pred_check
      _
    $region19: #{tpu_custom_call.1} parent=1 // pred_check_branch
      %40 = sbr.rel (0) target = $region21
    $region20: #{tpu_custom_call.1} parent=1 // pred_region
      _
    $region21: #{tpu_custom_call.1} parent=1 // pred_fallthru
      _
    // Predicated region
    $region22: #{tpu_custom_call.1} parent=1 // pred_check
      _
    $region23: #{tpu_custom_call.1} parent=1 // pred_check_branch
      %42 = sbr.rel (0) target = $region25
    $region24: #{tpu_custom_call.1} parent=1 // pred_region
      %43 = dma.done [#allocation6], 16
    $region25: #{tpu_custom_call.1} parent=1 // pred_fallthru
      _
    // Predicated region
    $region26: #{tpu_custom_call.1} parent=1 // pred_check
      _
    $region27: #{tpu_custom_call.1} parent=1 // pred_check_branch
      %45 = sbr.rel (0) target = $region29
    $region28: #{tpu_custom_call.1} parent=1 // pred_region
      %46 = dma.done [#allocation4], 2048
    $region29: #{tpu_custom_call.1} parent=1 // pred_fallthru
      _
    %47 = sfence
    %p48 = scmp.eq.s32.totalorder 0, 0
    // Predicated region
    $region30: #{tpu_custom_call.1} parent=1 // pred_check
      %p49 = pneg %p48
    $region31: #{tpu_custom_call.1} parent=1 // pred_check_branch
      %51 = sbr.rel (%p49) target = $region33
    $region32: #{tpu_custom_call.1} parent=1 // pred_region
      %52 = vst [vmem:[#allocation2] sm:$0xff] 0.0
    $region33: #{tpu_custom_call.1} parent=1 // pred_fallthru
      _
    %v53 = vld [vmem:[#allocation2] sm:$0xff]
    %v54 = vld [vmem:[%s1] sm:$0xff]
    %v55 = vld [vmem:[#allocation7] sm:$0xff]
    %v56 = vld [vmem:[#allocation7 + $0x8] sm:$0xff]
    %v57 = vld [vmem:[#allocation7 + $0x10] sm:$0xff]
    %v58 = vld [vmem:[#allocation7 + $0x18] sm:$0xff]
    %v59 = vld [vmem:[#allocation7 + $0x20] sm:$0xff]
    %v60 = vld [vmem:[#allocation7 + $0x28] sm:$0xff]
    %v61 = vld [vmem:[#allocation7 + $0x30] sm:$0xff]
    %v62 = vld [vmem:[#allocation7 + $0x38] sm:$0xff]
    %v63 = vld [vmem:[#allocation7 + $0x40] sm:$0xff]
    %v64 = vld [vmem:[#allocation7 + $0x48] sm:$0xff]
    %v65 = vld [vmem:[#allocation7 + $0x50] sm:$0xff]
    %v66 = vld [vmem:[#allocation7 + $0x58] sm:$0xff]
    %v67 = vld [vmem:[#allocation7 + $0x60] sm:$0xff]
    %v68 = vld [vmem:[#allocation7 + $0x68] sm:$0xff]
    %v69 = vld [vmem:[#allocation7 + $0x70] sm:$0xff]
    %v70 = vld [vmem:[#allocation7 + $0x78] sm:$0xff]
    %71 = vmatprep.subr.mxu0 0.0
    %72 = vmatpush1.xpose.msra.mxu0 %v70
    %73 = vmatprep.subr.mxu0 0.0
    %74 = vmatpush1.xpose.msra.mxu0 %v69
    %75 = vmatprep.subr.mxu0 0.0
    %76 = vmatpush1.xpose.msra.mxu0 %v68
    %77 = vmatprep.subr.mxu0 0.0
    %78 = vmatpush1.xpose.msra.mxu0 %v67
    %79 = vmatprep.subr.mxu0 0.0
    %80 = vmatpush1.xpose.msra.mxu0 %v66
    %81 = vmatprep.subr.mxu0 0.0
    %82 = vmatpush1.xpose.msra.mxu0 %v65
    %83 = vmatprep.subr.mxu0 0.0
    %84 = vmatpush1.xpose.msra.mxu0 %v64
    %85 = vmatprep.subr.mxu0 0.0
    %86 = vmatpush1.xpose.msra.mxu0 %v63
    %87 = vmatprep.subr.mxu0 0.0
    %88 = vmatpush1.xpose.msra.mxu0 %v62
    %89 = vmatprep.subr.mxu0 0.0
    %90 = vmatpush1.xpose.msra.mxu0 %v61
    %91 = vmatprep.subr.mxu0 0.0
    %92 = vmatpush1.xpose.msra.mxu0 %v60
    %93 = vmatprep.subr.mxu0 0.0
    %94 = vmatpush1.xpose.msra.mxu0 %v59
    %95 = vmatprep.subr.mxu0 0.0
    %96 = vmatpush1.xpose.msra.mxu0 %v58
    %97 = vmatprep.subr.mxu0 0.0
    %98 = vmatpush1.xpose.msra.mxu0 %v57
    %99 = vmatprep.subr.mxu0 0.0
    %100 = vmatpush1.xpose.msra.mxu0 %v56
    %101 = vmatprep.subr.mxu0 0.0
    %102 = vmatpush1.xpose.msra.mxu0 %v55
    %103 = vmatprep.subr.mxu0 0.0
    %104 = vmatpush2.xpose.msra.mxu0 0.0
    %105 = vmatprep.subr.mxu0 0.0
    %106 = vmatpush2.xpose.msra.mxu0 0.0
    %107 = vmatprep.subr.mxu0 0.0
    %108 = vmatpush2.xpose.msra.mxu0 0.0
    %109 = vmatprep.subr.mxu0 0.0
    %110 = vmatpush2.xpose.msra.mxu0 0.0
    %111 = vmatprep.subr.mxu0 0.0
    %112 = vmatpush2.xpose.msra.mxu0 0.0
    %113 = vmatprep.subr.mxu0 0.0
    %114 = vmatpush2.xpose.msra.mxu0 0.0
    %115 = vmatprep.subr.mxu0 0.0
    %116 = vmatpush2.xpose.msra.mxu0 0.0
    %117 = vmatprep.subr.mxu0 0.0
    %118 = vmatpush2.xpose.msra.mxu0 0.0
    %119 = vmatprep.subr.mxu0 0.0
    %120 = vmatpush2.xpose.msra.mxu0 0.0
    %121 = vmatprep.subr.mxu0 0.0
    %122 = vmatpush2.xpose.msra.mxu0 0.0
    %123 = vmatprep.subr.mxu0 0.0
    %124 = vmatpush2.xpose.msra.mxu0 0.0
    %125 = vmatprep.subr.mxu0 0.0
    %126 = vmatpush2.xpose.msra.mxu0 0.0
    %127 = vmatprep.subr.mxu0 0.0
    %128 = vmatpush2.xpose.msra.mxu0 0.0
    %129 = vmatprep.subr.mxu0 0.0
    %130 = vmatpush2.xpose.msra.mxu0 0.0
    %131 = vmatprep.subr.mxu0 0.0
    %132 = vmatpush2.xpose.msra.mxu0 0.0
    %133 = vmatprep.subr.mxu0 0.0
    %134 = vmatpush2.xpose.msra.mxu0 0.0
    %135 = vmatprep.mubr.f32.mxu0 0.0
    %136 = vmatmul.mubr.f32.gmra.mxu0 %v54
    %v137 = vpop.f32.mrf.mxu0
    %v138 = vadd.f32 0.0, %v137
    %v139 = vpop.f32.mrf.mxu0
    %140 = vdwg.mxu0
    %v141 = vadd.f32 %v53, %v138
    %142 = vst [vmem:[#allocation2] sm:$0xff] %v141
    // Predicated region
    $region34: #{tpu_custom_call.1} parent=1 // pred_check
      %p143 = pneg %p48
    $region35: #{tpu_custom_call.1} parent=1 // pred_check_branch
      %145 = sbr.rel (%p143) target = $region37
    $region36: #{tpu_custom_call.1} parent=1 // pred_region
      %v146 = vld [vmem:[%s3] sm:$0xff]
      %v147 = vld [vmem:[#allocation2] sm:$0xff]
      %v148 = vmul.f32 %v147, 2.0
      %150 = vset.pattern.permute.xlu0 0
      %151 = vperm.xlu0 %150, %v146
      %v152 = vpop.permute.xlu0 %151
      %v154 = vsub.f32 %v152, %v148
      %v155 = vld [vmem:[%s4] sm:$0x1]
      %v157 = vlaneseq
      %v158 = vshrl.u32 %v157, 7
      %v159 = vsub.s32 0, %v158
      %v160 = vrot.slane %v155, %v159
      %v162 = vadd.f32 %v154, %v160
      %v163 = vmax.f32 %v162, 0.0
      %s164 = sld [smem:[#allocation3]]
      %v165 = vstv %s164
      %v166 = vmul.f32 %v163, %v165
      %v167 = vmul.f32 %v166, 1.442695
      %v168 = vpow.pop %v167
      %169 = vst [vmem:[#allocation8] sm:$0xff] %v168
    $region37: #{tpu_custom_call.1} parent=1 // pred_fallthru
      _
    // Predicated region
    $region38: #{tpu_custom_call.1} parent=1 // pred_check
      _
    $region39: #{tpu_custom_call.1} parent=1 // pred_check_branch
      %171 = sbr.rel (0) target = $region41
    $region40: #{tpu_custom_call.1} parent=1 // pred_region
      %s173 = ssub.s32 128, 128
      %174 = vsyncadd [#allocation5], %s173
      %s176 = sshll.u32 [#allocation8], 4
      %s177 = int_to_ptr.vmem [resolvable:$true] %s176
      %179 = dma.vmem_to_hbm [thread:$0]  %s177, 128, %s5, [#allocation5]
    $region41: #{tpu_custom_call.1} parent=1 // pred_fallthru
      _
    // Predicated region
    $region42: #{tpu_custom_call.1} parent=1 // pred_check
      _
    $region43: #{tpu_custom_call.1} parent=1 // pred_check_branch
      %181 = sbr.rel (0) target = $region45
    $region44: #{tpu_custom_call.1} parent=1 // pred_region
      %182 = dma.done [#allocation5], 128
    $region45: #{tpu_custom_call.1} parent=1 // pred_fallthru
      _
    %183 = vsyncpa [#allocation4], 1
    %184 = vsyncpa [#allocation5], 1
    %185 = vsyncpa [#allocation6], 1

</llo_original>
